<compile_context>
chip_gen: v7x
topology: tpu7x:2x2x1
jax: 0.10.0
libtpu: 0.0.40
codegen_flags: <defaults>
</compile_context>

<pallas_src>
import functools

import jax
import jax.numpy as jnp
import numpy as np
from jax.experimental import pallas as pl
from jax.experimental.pallas import tpu as pltpu


def _round_up(x, m):
    return (x + m - 1) // m * m


def _graph_conv_kernel(ap_ref, xp_ref, ws_ref, wn_ref, out_ref, *,
                       row_tile, blocks_per_deg):
    """One (degree d, row tile r) step of the graph convolution.

    ap_ref:  (TM, Np)  bf16 neighbor-count stripe for this row tile
    xp_ref:  (Np, FP)  f32 padded node features [X | 1 | 0-pad] (VMEM resident)
    ws_ref:  (FP, O)   f32 self weights for degree d (bias folded into row F)
    wn_ref:  (FP, O)   f32 neighbor weights for degree d (bias row is zero)
    out_ref: (TM, O)
    """
    d = pl.program_id(0)
    r = pl.program_id(1)
    row0 = pl.multiple_of((d * blocks_per_deg + r) * row_tile, row_tile)

    # Self features for this tile: slice of the resident padded feature slab.
    x_self = xp_ref[pl.ds(row0, row_tile), :]                       # (TM, FP)

    # Neighbor sum for every row of the tile as one MXU matmul.
    # bf16 adjacency holds exact small integer counts; upcast is exact.
    nbr = jnp.dot(ap_ref[...].astype(jnp.float32), xp_ref[...],
                  preferred_element_type=jnp.float32)                # (TM, FP)

    # Two accumulating dots against this degree's weights only (no concat,
    # no one-hot select, bias comes in through the ones column).
    out = jnp.dot(x_self, ws_ref[...], preferred_element_type=jnp.float32)
    out = out + jnp.dot(nbr, wn_ref[...], preferred_element_type=jnp.float32)
    out_ref[...] = out.astype(out_ref.dtype)


def pack_graph(deg_slice, deg_adj_list, num_nodes, row_tile=16):
    """Cacheable per-graph packing: degree-padded layout + bf16 adjacency.

    row_tile must be a multiple of 16 (bf16 sublane packing). Use 128+ for real
    graph sizes so the MXU is fed; 16 keeps the tiny demo padding small.
    """
    assert row_tile % 16 == 0, "row_tile must be a multiple of 16 (bf16 tiling)"
    deg_slice = np.asarray(deg_slice)
    D = int(deg_slice.shape[0])
    starts = deg_slice[:, 0].astype(np.int64)
    counts = deg_slice[:, 1].astype(np.int64)

    max_count = int(counts.max()) if D > 0 else 0
    pb = max(_round_up(max(max_count, 1), row_tile), row_tile)   # rows per degree block
    blocks_per_deg = pb // row_tile
    n_main = D * pb

    # Map original node index -> padded row.
    pos = -np.ones((num_nodes,), np.int64)
    for d in range(D):
        pos[starts[d]:starts[d] + counts[d]] = d * pb + np.arange(counts[d])
    uncovered = np.where(pos < 0)[0]          # nodes outside every degree slice
    np_total = n_main + (_round_up(len(uncovered), row_tile) if len(uncovered) else 0)
    pos[uncovered] = n_main + np.arange(len(uncovered))

    # Gather/scatter metadata for building the padded feature slab on device.
    src_idx = np.zeros((np_total,), np.int32)
    valid = np.zeros((np_total,), np.float32)
    src_idx[pos] = np.arange(num_nodes, dtype=np.int32)
    valid[pos] = 1.0

    # Dense padded neighbor-count matrix, bf16 (exact small integers).
    adj_mat = np.zeros((n_main, np_total), np.float32)
    for d in range(1, D):
        cnt = int(counts[d])
        if cnt == 0 or (d - 1) >= len(deg_adj_list):
            continue
        adj = np.asarray(deg_adj_list[d - 1]).reshape(cnt, -1)     # (cnt, d)
        rows = d * pb + np.arange(cnt)
        cols = pos[adj.reshape(-1)]
        np.add.at(adj_mat, (np.repeat(rows, adj.shape[1]), cols), 1.0)

    # Valid output rows, degree-block order == reference torch.cat order.
    out_perm = (np.concatenate(
        [d * pb + np.arange(int(counts[d])) for d in range(D)])
        if D else np.zeros((0,))).astype(np.int32)

    return dict(
        degree_dim=D, row_tile=row_tile, blocks_per_deg=blocks_per_deg,
        n_main=n_main, n_padded=np_total,
        adjacency=jnp.asarray(adj_mat.astype(np.float32)).astype(jnp.bfloat16),
        src_idx=jnp.asarray(src_idx),
        valid=jnp.asarray(valid),
        out_perm=jnp.asarray(out_perm),
    )


def pack_weights(W_list, b_list, degree_dim, in_channels, output_dim):
    """Cacheable per-layer packing: per-degree weight slabs with folded bias."""
    F, O = in_channels, output_dim
    fp = _round_up(F + 1, 8)                 # features + ones column, sublane-padded
    w_self = np.zeros((degree_dim * fp, O), np.float32)
    w_nbr = np.zeros((degree_dim * fp, O), np.float32)
    idx = 0
    for d in range(degree_dim):
        r0 = d * fp
        if d == 0:
            w_self[r0:r0 + F] = np.asarray(W_list[idx], np.float32)
            w_self[r0 + F] = np.asarray(b_list[idx], np.float32)
            idx += 1
        else:
            w_nbr[r0:r0 + F] = np.asarray(W_list[idx], np.float32)
            bias = np.asarray(b_list[idx], np.float32)
            idx += 1
            w_self[r0:r0 + F] = np.asarray(W_list[idx], np.float32)
            bias = bias + np.asarray(b_list[idx], np.float32)
            idx += 1
            w_self[r0 + F] = bias
    return dict(in_channels=F, output_dim=O, feat_pad=fp,
                w_self=jnp.asarray(w_self), w_nbr=jnp.asarray(w_nbr))


def graph_conv_deepchem(node_features, graph, weights):
    """Applies the packed graph convolution; returns (sum(counts), O) like forward()."""
    x = jnp.asarray(node_features, jnp.float32)
    F = weights["in_channels"]
    fp = weights["feat_pad"]
    O = weights["output_dim"]
    D = graph["degree_dim"]
    tm = graph["row_tile"]
    bpd = graph["blocks_per_deg"]
    n_main = graph["n_main"]
    np_total = graph["n_padded"]

    # Scatter X into the degree-padded layout and append the ones column for the
    # folded bias (cheap XLA gather outside the kernel; padding rows are zero).
    xp = x[graph["src_idx"]] * graph["valid"][:, None]
    xp = jnp.concatenate(
        [xp,
         jnp.ones((np_total, 1), jnp.float32),
         jnp.zeros((np_total, fp - F - 1), jnp.float32)], axis=1)

    kernel = functools.partial(_graph_conv_kernel, row_tile=tm, blocks_per_deg=bpd)
    out_padded = pl.pallas_call(
        kernel,
        out_shape=jax.ShapeDtypeStruct((n_main, O), jnp.float32),
        grid=(D, bpd),
        in_specs=[
            # bf16 adjacency: only a (row_tile, Np) stripe resident per step.
            pl.BlockSpec((tm, np_total), lambda d, r: (d * bpd + r, 0)),
            # Padded features: constant block index -> stays VMEM-resident.
            pl.BlockSpec((np_total, fp), lambda d, r: (0, 0)),
            # Per-degree weight blocks: only degree d's columns are touched.
            pl.BlockSpec((fp, O), lambda d, r: (d, 0)),
            pl.BlockSpec((fp, O), lambda d, r: (d, 0)),
        ],
        out_specs=pl.BlockSpec((tm, O), lambda d, r: (d * bpd + r, 0)),
        compiler_params=pltpu.CompilerParams(
            dimension_semantics=("parallel", "parallel")),
    )(graph["adjacency"], xp, weights["w_self"], weights["w_nbr"])

    # Drop padding rows; remaining rows are already in degree-concat order.
    return jnp.take(out_padded, graph["out_perm"], axis=0)


def _reference(node_features, deg_slice, deg_adj_list, W_list, b_list):
    """Plain numpy mirror of the PyTorch forward, for verification."""
    x = np.asarray(node_features, np.float64)
    deg_slice = np.asarray(deg_slice)
    Ws = [np.asarray(w, np.float64) for w in W_list]
    bs = [np.asarray(b, np.float64) for b in b_list]

    nbr_sums = [np.asarray(x[np.asarray(adj)]).sum(axis=1) for adj in deg_adj_list]

    outs, widx = [], 0
    for deg in range(deg_slice.shape[0]):
        start, count = int(deg_slice[deg, 0]), int(deg_slice[deg, 1])
        self_feat = x[start:start + count]
        if deg == 0:
            out = self_feat @ Ws[widx] + bs[widx]
            widx += 1
        else:
            nbr_feat = nbr_sums[deg - 1]
            out = nbr_feat @ Ws[widx] + bs[widx]
            widx += 1
            out = out + self_feat @ Ws[widx] + bs[widx]
            widx += 1
        outs.append(out)
    return np.concatenate(outs, axis=0)


if __name__ == "__main__":
    # Small shapes consistent with the module; output_dim=128 keeps stores lane-dense.
    in_channels, output_dim = 16, 128
    min_deg, max_deg = 0, 3
    degree_dim = max_deg + 1 - min_deg                 # 4
    param_tuple_size = 2 * max_deg + (1 - min_deg)     # 7

    counts = [4, 6, 6, 8]                              # nodes of degree 0..3 (sorted)
    num_nodes = int(sum(counts))                       # 24
    starts = np.cumsum([0] + counts[:-1])
    deg_slice = np.stack([starts, np.asarray(counts)], axis=1).astype(np.int32)

    key = jax.random.PRNGKey(0)
    kx, kadj, kw, kb = jax.random.split(key, 4)
    node_features = jax.random.normal(kx, (num_nodes, in_channels), jnp.float32)

    # Neighbor index lists for degrees 1..max_deg, shapes (count_d, d).
    deg_adj_list = []
    adj_keys = jax.random.split(kadj, max_deg)
    for d in range(1, max_deg + 1):
        deg_adj_list.append(
            jax.random.randint(adj_keys[d - 1], (counts[d], d), 0, num_nodes, jnp.int32))

    wkeys = jax.random.split(kw, param_tuple_size)
    bkeys = jax.random.split(kb, param_tuple_size)
    W_list = [jax.random.uniform(wkeys[i], (in_channels, output_dim),
                                 jnp.float32, -0.1, 0.1)
              for i in range(param_tuple_size)]
    b_list = [jax.random.uniform(bkeys[i], (output_dim,), jnp.float32, -0.1, 0.1)
              for i in range(param_tuple_size)]

    # Packing is off the per-call path (cacheable per graph / per layer).
    graph = pack_graph(deg_slice, deg_adj_list, num_nodes, row_tile=16)
    weights = pack_weights(W_list, b_list, degree_dim, in_channels, output_dim)

    out = graph_conv_deepchem(node_features, graph, weights)
    jax.block_until_ready(out)

    ref = _reference(node_features, deg_slice, deg_adj_list, W_list, b_list)
    assert out.shape == (num_nodes, output_dim)
    np.testing.assert_allclose(np.asarray(out), ref, atol=1e-4, rtol=1e-4)

    print("KERNEL_OK")
</pallas_src>

<mosaic_0001>
module attributes {stable_mosaic.version = 11 : i64} {
  func.func @_graph_conv_kernel(%arg0: i32, %arg1: i32, %arg2: memref<16x64xbf16, #tpu.memory_space<vmem>>, %arg3: memref<64x24xf32, #tpu.memory_space<vmem>>, %arg4: memref<24x128xf32, #tpu.memory_space<vmem>>, %arg5: memref<24x128xf32, #tpu.memory_space<vmem>>, %arg6: memref<16x128xf32, #tpu.memory_space<vmem>>) attributes {dimension_semantics = [#tpu.dimension_semantics<parallel>, #tpu.dimension_semantics<parallel>], iteration_bounds = array<i64: 4, 1>, scalar_prefetch = 0 : i64, scratch_operands = 0 : i64, tpu.core_type = #tpu.core_type<tc>, window_params = [{transform_indices = @transform_0, window_bounds = array<i64: 16, 64>}, {pipeline_mode = #tpu.pipeline_mode<synchronous>, transform_indices = @transform_1, window_bounds = array<i64: 64, 24>}, {transform_indices = @transform_2, window_bounds = array<i64: 24, 128>}, {transform_indices = @transform_3, window_bounds = array<i64: 24, 128>}, {transform_indices = @transform_4, window_bounds = array<i64: 16, 128>}]} {
    %c1_i32 = arith.constant 1 : i32
    %0 = arith.muli %arg0, %c1_i32 : i32
    %1 = arith.addi %0, %arg1 : i32
    %c16_i32 = arith.constant 16 : i32
    %2 = arith.muli %1, %c16_i32 : i32
    %3 = tpu.assume_multiple %2, 16 : i32
    %4 = arith.index_cast %3 : i32 to index
    %c0 = arith.constant 0 : index
    %5 = vector.load %arg3[%4, %c0] : memref<64x24xf32, #tpu.memory_space<vmem>>, vector<16x24xf32>
    %c0_0 = arith.constant 0 : index
    %c0_1 = arith.constant 0 : index
    %6 = vector.load %arg2[%c0_0, %c0_1] : memref<16x64xbf16, #tpu.memory_space<vmem>>, vector<16x64xbf16>
    %7 = arith.extf %6 : vector<16x64xbf16> to vector<16x64xf32>
    %c0_2 = arith.constant 0 : index
    %c0_3 = arith.constant 0 : index
    %8 = vector.load %arg3[%c0_2, %c0_3] : memref<64x24xf32, #tpu.memory_space<vmem>>, vector<64x24xf32>
    %cst = arith.constant dense<0.000000e+00> : vector<16x24xf32>
    %9 = tpu.matmul %7, %8, %cst {dimension_numbers = #tpu.dot_dimension_numbers<[1], [0], [0], [1], [0, 0, 1, 1], [], []>} : vector<16x64xf32>, vector<64x24xf32>, vector<16x24xf32> -> vector<16x24xf32>
    %c0_4 = arith.constant 0 : index
    %c0_5 = arith.constant 0 : index
    %10 = vector.load %arg4[%c0_4, %c0_5] : memref<24x128xf32, #tpu.memory_space<vmem>>, vector<24x128xf32>
    %cst_6 = arith.constant dense<0.000000e+00> : vector<16x128xf32>
    %11 = tpu.matmul %5, %10, %cst_6 {dimension_numbers = #tpu.dot_dimension_numbers<[1], [0], [0], [1], [0, 0, 1, 1], [], []>} : vector<16x24xf32>, vector<24x128xf32>, vector<16x128xf32> -> vector<16x128xf32>
    %c0_7 = arith.constant 0 : index
    %c0_8 = arith.constant 0 : index
    %12 = vector.load %arg5[%c0_7, %c0_8] : memref<24x128xf32, #tpu.memory_space<vmem>>, vector<24x128xf32>
    %cst_9 = arith.constant dense<0.000000e+00> : vector<16x128xf32>
    %13 = tpu.matmul %9, %12, %cst_9 {dimension_numbers = #tpu.dot_dimension_numbers<[1], [0], [0], [1], [0, 0, 1, 1], [], []>} : vector<16x24xf32>, vector<24x128xf32>, vector<16x128xf32> -> vector<16x128xf32>
    %14 = arith.addf %11, %13 : vector<16x128xf32>
    %c0_10 = arith.constant 0 : index
    %c0_11 = arith.constant 0 : index
    %15 = vector.load %arg6[%c0_10, %c0_11] : memref<16x128xf32, #tpu.memory_space<vmem>>, vector<16x128xf32>
    tpu.vector_store %arg6[%c0_10, %c0_11], %14 {strides = array<i32>} : memref<16x128xf32, #tpu.memory_space<vmem>>, vector<16x128xf32>,
    return
  }
  func.func @transform_0(%arg0: i32, %arg1: i32) -> (i32, i32) {
    %c1_i32 = arith.constant 1 : i32
    %0 = arith.muli %arg0, %c1_i32 : i32
    %1 = arith.addi %0, %arg1 : i32
    %c0_i32 = arith.constant 0 : i32
    %c0_i32_0 = arith.constant 0 : i32
    return %1, %c0_i32 : i32, i32
  }
  func.func @transform_1(%arg0: i32, %arg1: i32) -> (i32, i32) {
    %c0_i32 = arith.constant 0 : i32
    %c0_i32_0 = arith.constant 0 : i32
    %c0_i32_1 = arith.constant 0 : i32
    return %c0_i32, %c0_i32_0 : i32, i32
  }
  func.func @transform_2(%arg0: i32, %arg1: i32) -> (i32, i32) {
    %c0_i32 = arith.constant 0 : i32
    %c0_i32_0 = arith.constant 0 : i32
    return %arg0, %c0_i32 : i32, i32
  }
  func.func @transform_3(%arg0: i32, %arg1: i32) -> (i32, i32) {
    %c0_i32 = arith.constant 0 : i32
    %c0_i32_0 = arith.constant 0 : i32
    return %arg0, %c0_i32 : i32, i32
  }
  func.func @transform_4(%arg0: i32, %arg1: i32) -> (i32, i32) {
    %c1_i32 = arith.constant 1 : i32
    %0 = arith.muli %arg0, %c1_i32 : i32
    %1 = arith.addi %0, %arg1 : i32
    %c0_i32 = arith.constant 0 : i32
    %c0_i32_0 = arith.constant 0 : i32
    return %1, %c0_i32 : i32, i32
  }
}

</mosaic_0001>

<llo_original>
// kernel: tpu_custom_call.1
$region0: #{tpu_custom_call.1}
  #allocation0 [shape = 'u32[]', space=smem, size = 0x4, offset = 0x4, fixed_abs, tag = 'smem constant byte address 0x4 - core index']
  #allocation1 [shape = 'u32[144,128]{1,0:T(1,128)}', space=vmem, size = 0x12000, scoped, tag = 'internal scratch']
  %s0 = inlined_call_operand.hbm [shape: bf16[64,64], index: 0, kind: input, shape index: {}]
  %s1 = inlined_call_operand.vmem [shape: f32[64,24], index: 1, kind: input, shape index: {}]
  %s2 = inlined_call_operand.hbm [shape: f32[96,128], index: 2, kind: input, shape index: {}]
  %s3 = inlined_call_operand.vmem [shape: f32[96,128], index: 3, kind: input, shape index: {}]
  %s4 = inlined_call_operand.hbm [shape: f32[64,128], index: 4, kind: output, shape index: {}]
  %s5 = sld [smem:[#allocation0]]
  $region57: #{tpu_custom_call.1} parent=0
    _
  %s7 = ssub.s32 1, %s5
  %s8 = scalar_select 0, %s7, %s5
  $region1: #{tpu_custom_call.1} parent=0
    #allocation2 [shape = 'u8[8192]{0}', space=vmem, size = 0x2000, scoped, tag = 'input window, operand 0']
    #allocation3 [shape = 's32[2]{0}', space=sflag, size = 0x8, scoped, tag = 'scoped memory for tpu_custom_call.1']
    #allocation4 [shape = 's32[2]{0}', space=sflag, size = 0x8, scoped, tag = 'scoped memory for tpu_custom_call.1']
    #allocation5 [shape = 'u8[24576]{0}', space=vmem, size = 0x6000, scoped, tag = 'input window, operand 2']
    #allocation6 [shape = 's32[2]{0}', space=sflag, size = 0x8, scoped, tag = 'scoped memory for tpu_custom_call.1']
    #allocation7 [shape = 'u8[16384]{0}', space=vmem, size = 0x4000, scoped, tag = 'output window, operand 0']
    %9 = vsyncpa [#allocation3], 0
    %s10 = scalar_lea.sflag [#allocation3], 1
    %11 = vsyncpa %s10, 0
    %12 = vsyncpa [#allocation6], 0
    %s13 = scalar_lea.sflag [#allocation6], 1
    %14 = vsyncpa %s13, 0
    %15 = vsyncpa [#allocation4], 0
    %s16 = scalar_lea.sflag [#allocation4], 1
    %17 = vsyncpa %s16, 0
    loop: start=0, step=1, limit=6
    $region2: #{tpu_custom_call.1} parent=1 // loop_pre_header
      _
    $region3: #{tpu_custom_call.1} parent=1 // loop_header
      %s19 = sphi 0, %s23
      %p20 = scmp.ge.s32.totalorder %s19, 6
      %s26 = sphi 0, %s38
      %s27 = sphi 0, %s34
      %s28 = sphi 0, %s26
      %s29 = sphi 0, %s27
      %s30 = sphi 0, %s28
      %s31 = sphi 0, %s29
      %s43 = sphi 0, %s45
      %s46 = sphi 0, %s43
      %s47 = sphi 0, %s46
      %s63 = sphi 0, %s47
      %s67 = sphi 0, %s67
      %s69 = sphi 0, %s67
      %s70 = sphi 0, %s69
      %s84 = sphi 0, %s70
      %s90 = sphi 0, %s92
      %s93 = sphi 0, %s90
      %s94 = sphi 0, %s93
      %s110 = sphi 0, %s94
      %s116 = sphi 0, %s118
      %s119 = sphi 0, %s116
      %s120 = sphi 0, %s119
      %s136 = sphi 0, %s120
      %s144 = sphi 0, %s146
      %s147 = sphi 0, %s144
      %s148 = sphi 0, %s147
      %s164 = sphi 0, %s148
    $region4: #{tpu_custom_call.1} parent=1 // loop_header_branch
      %22 = sbr.rel (%p20) target = $region8
    $region5: #{tpu_custom_call.1} parent=1 // loop_body
      %s24 = ssub.s32 %s19, 1
      %s25 = ssub.s32 %s19, 2
      %s32 = sadd.s32 1, %s27
      %p33 = scmp.ge.s32.totalorder %s32, 1
      %s34 = scalar_select %p33, 0, %s32
      %s35 = sadd.s32 1, %s26
      %s36 = scalar_select %p33, %s35, %s26
      %p37 = scmp.ge.s32.totalorder %s36, 4
      %s38 = scalar_select %p37, 0, %s36
      %s39 = sadd.s32 %s26, %s27
      %s40 = sadd.s32 %s38, %s34
      %s41 = ssub.s32 %s39, %s40
      %p42 = scmp.eq.s32.totalorder %s41, 0
      %s44 = sadd.s32 %s43, 1
      %s45 = scalar_select %p42, %s43, %s44
      %p48 = pneg %p42
      %p49 = scmp.eq.s32.totalorder %s19, 3
      %p50 = por %p48, %p49
      %p51 = scmp.ne.s32.totalorder %s43, %s46
      %p52 = scmp.eq.s32.totalorder %s19, 0
      %p53 = por %p51, %p52
      %p54 = scmp.ne.s32.totalorder %s43, %s46
      %p55 = scmp.eq.s32.totalorder %s24, 3
      %p56 = por %p54, %p55
      %p57 = scmp.ne.s32.totalorder %s46, %s47
      %p58 = scmp.eq.s32.totalorder %s24, 0
      %p59 = por %p57, %p58
      %p60 = scmp.ne.s32.totalorder %s46, %s47
      %p61 = scmp.eq.s32.totalorder %s25, 3
      %p62 = por %p60, %p61
      %p64 = scmp.ne.s32.totalorder %s47, %s63
      %p65 = scmp.eq.s32.totalorder %s25, 0
      %p66 = por %p64, %p65
      %s68 = sadd.s32 %s67, 1
      %p71 = scmp.eq.s32.totalorder %s19, 3
      %p72 = scmp.ne.s32.totalorder %s67, %s69
      %p73 = scmp.eq.s32.totalorder %s19, 0
      %p74 = por %p72, %p73
      %p75 = scmp.ne.s32.totalorder %s67, %s69
      %p76 = scmp.eq.s32.totalorder %s24, 3
      %p77 = por %p75, %p76
      %p78 = scmp.ne.s32.totalorder %s69, %s70
      %p79 = scmp.eq.s32.totalorder %s24, 0
      %p80 = por %p78, %p79
      %p81 = scmp.ne.s32.totalorder %s69, %s70
      %p82 = scmp.eq.s32.totalorder %s25, 3
      %p83 = por %p81, %p82
      %p85 = scmp.ne.s32.totalorder %s70, %s84
      %p86 = scmp.eq.s32.totalorder %s25, 0
      %p87 = por %p85, %p86
      %s88 = ssub.s32 %s26, %s38
      %p89 = scmp.eq.s32.totalorder %s88, 0
      %s91 = sadd.s32 %s90, 1
      %s92 = scalar_select %p89, %s90, %s91
      %p95 = pneg %p89
      %p96 = scmp.eq.s32.totalorder %s19, 3
      %p97 = por %p95, %p96
      %p98 = scmp.ne.s32.totalorder %s90, %s93
      %p99 = scmp.eq.s32.totalorder %s19, 0
      %p100 = por %p98, %p99
      %p101 = scmp.ne.s32.totalorder %s90, %s93
      %p102 = scmp.eq.s32.totalorder %s24, 3
      %p103 = por %p101, %p102
      %p104 = scmp.ne.s32.totalorder %s93, %s94
      %p105 = scmp.eq.s32.totalorder %s24, 0
      %p106 = por %p104, %p105
      %p107 = scmp.ne.s32.totalorder %s93, %s94
      %p108 = scmp.eq.s32.totalorder %s25, 3
      %p109 = por %p107, %p108
      %p111 = scmp.ne.s32.totalorder %s94, %s110
      %p112 = scmp.eq.s32.totalorder %s25, 0
      %p113 = por %p111, %p112
      %s114 = ssub.s32 %s26, %s38
      %p115 = scmp.eq.s32.totalorder %s114, 0
      %s117 = sadd.s32 %s116, 1
      %s118 = scalar_select %p115, %s116, %s117
      %p121 = pneg %p115
      %p122 = scmp.eq.s32.totalorder %s19, 3
      %p123 = por %p121, %p122
      %p124 = scmp.ne.s32.totalorder %s116, %s119
      %p125 = scmp.eq.s32.totalorder %s19, 0
      %p126 = por %p124, %p125
      %p127 = scmp.ne.s32.totalorder %s116, %s119
      %p128 = scmp.eq.s32.totalorder %s24, 3
      %p129 = por %p127, %p128
      %p130 = scmp.ne.s32.totalorder %s119, %s120
      %p131 = scmp.eq.s32.totalorder %s24, 0
      %p132 = por %p130, %p131
      %p133 = scmp.ne.s32.totalorder %s119, %s120
      %p134 = scmp.eq.s32.totalorder %s25, 3
      %p135 = por %p133, %p134
      %p137 = scmp.ne.s32.totalorder %s120, %s136
      %p138 = scmp.eq.s32.totalorder %s25, 0
      %p139 = por %p137, %p138
      %s140 = sadd.s32 %s26, %s27
      %s141 = sadd.s32 %s38, %s34
      %s142 = ssub.s32 %s140, %s141
      %p143 = scmp.eq.s32.totalorder %s142, 0
      %s145 = sadd.s32 %s144, 1
      %s146 = scalar_select %p143, %s144, %s145
      %p149 = pneg %p143
      %p150 = scmp.eq.s32.totalorder %s19, 3
      %p151 = por %p149, %p150
      %p152 = scmp.ne.s32.totalorder %s144, %s147
      %p153 = scmp.eq.s32.totalorder %s19, 0
      %p154 = por %p152, %p153
      %p155 = scmp.ne.s32.totalorder %s144, %s147
      %p156 = scmp.eq.s32.totalorder %s24, 3
      %p157 = por %p155, %p156
      %p158 = scmp.ne.s32.totalorder %s147, %s148
      %p159 = scmp.eq.s32.totalorder %s24, 0
      %p160 = por %p158, %p159
      %p161 = scmp.ne.s32.totalorder %s147, %s148
      %p162 = scmp.eq.s32.totalorder %s25, 3
      %p163 = por %p161, %p162
      %p165 = scmp.ne.s32.totalorder %s148, %s164
      %p166 = scmp.eq.s32.totalorder %s25, 0
      %p167 = por %p165, %p166
      %p168 = scmp.le.s32.totalorder 1, %s19
      %p169 = scmp.lt.s32.totalorder %s19, 5
      %p170 = pnand %p168, %p169
      %p171 = pneg %p170
      // Predicated region
      $region9: #{tpu_custom_call.1} parent=5 // pred_check
        _
      $region10: #{tpu_custom_call.1} parent=5 // pred_check_branch
        %173 = sbr.rel (%p170) target = $region12
      $region11: #{tpu_custom_call.1} parent=5 // pred_region
        %s174 = ssub.s32 %s19, 1
        // Predicated region
        $region13: #{tpu_custom_call.1} parent=11 // pred_check
          %p175 = pneg %p80
        $region14: #{tpu_custom_call.1} parent=11 // pred_check_branch
          %177 = sbr.rel (%p175) target = $region16
        $region15: #{tpu_custom_call.1} parent=11 // pred_region
          _
        $region16: #{tpu_custom_call.1} parent=11 // pred_fallthru
          _
      $region12: #{tpu_custom_call.1} parent=5 // pred_fallthru
        _
      %p178 = scmp.lt.s32.totalorder %s19, 4
      // Predicated region
      $region17: #{tpu_custom_call.1} parent=5 // pred_check
        %p179 = pneg %p178
      $region18: #{tpu_custom_call.1} parent=5 // pred_check_branch
        %181 = sbr.rel (%p179) target = $region20
      $region19: #{tpu_custom_call.1} parent=5 // pred_region
        // Predicated region
        $region21: #{tpu_custom_call.1} parent=19 // pred_check
          %p182 = pneg %p53
        $region22: #{tpu_custom_call.1} parent=19 // pred_check_branch
          %184 = sbr.rel (%p182) target = $region24
        $region23: #{tpu_custom_call.1} parent=19 // pred_region
          %s185 = sand.u32 %s43, 1
          %s186 = scalar_lea.sflag [#allocation3], %s185
          %s187 = sand.u32 %s43, 1
          %s188 = smul.addr %s187, 8
          %s189 = scalar_lea.vmem [#allocation2], %s188
          %s190 = sadd.s32 %s26, %s27
          %s191 = smul.u32 2, %s190
          %s193 = ssub.s32 128, 128
          %194 = vsyncadd %s186, %s193
          %s195 = smul.addr %s191, 64
          %s196 = scalar_lea.hbm %s0, %s195
          %s197 = sshll.u32 %s189, 4
          %s198 = int_to_ptr.vmem [resolvable:$true] %s197
          %203 = dma.hbm_to_vmem [thread:$0]  %s196, 128, %s198, %s186, 64, 64, 4
        $region24: #{tpu_custom_call.1} parent=19 // pred_fallthru
          _
        // Predicated region
        $region25: #{tpu_custom_call.1} parent=19 // pred_check
          %p204 = pneg %p100
        $region26: #{tpu_custom_call.1} parent=19 // pred_check_branch
          %206 = sbr.rel (%p204) target = $region28
        $region27: #{tpu_custom_call.1} parent=19 // pred_region
          %s207 = sand.u32 %s90, 1
          %s208 = scalar_lea.sflag [#allocation6], %s207
          %s209 = sand.u32 %s90, 1
          %s210 = smul.addr %s209, 24
          %s211 = scalar_lea.vmem [#allocation5], %s210
          %s212 = smul.u32 3, %s26
          %s214 = ssub.s32 384, 384
          %215 = vsyncadd %s208, %s214
          %s216 = smul.addr %s212, 128
          %s217 = scalar_lea.hbm %s2, %s216
          %s218 = sshll.u32 %s211, 4
          %s219 = int_to_ptr.vmem [resolvable:$true] %s218
          %224 = dma.hbm_to_vmem [thread:$0]  %s217, 384, %s219, %s208, 128, 128, 8
        $region28: #{tpu_custom_call.1} parent=19 // pred_fallthru
          _
        // Predicated region
        $region29: #{tpu_custom_call.1} parent=19 // pred_check
          %p225 = pneg %p126
        $region30: #{tpu_custom_call.1} parent=19 // pred_check_branch
          %227 = sbr.rel (%p225) target = $region32
        $region31: #{tpu_custom_call.1} parent=19 // pred_region
          %s228 = smul.u32 3, %s26
          %p229 = scmp.lt.s32.totalorder %s228, 11
          %s230 = scalar_select %p229, %s228, 11
          %s231 = smul.addr %s230, 8
          %s232 = scalar_lea.vmem %s3, %s231
          %s233 = smul.u32 3, %s26
        $region32: #{tpu_custom_call.1} parent=19 // pred_fallthru
          _
      $region20: #{tpu_custom_call.1} parent=5 // pred_fallthru
        _
      %p234 = scmp.le.s32.totalorder 1, %s19
      %p235 = scmp.lt.s32.totalorder %s19, 5
      %p236 = pnand %p234, %p235
      %p237 = pneg %p236
      // Predicated region
      $region33: #{tpu_custom_call.1} parent=5 // pred_check
        _
      $region34: #{tpu_custom_call.1} parent=5 // pred_check_branch
        %239 = sbr.rel (%p236) target = $region36
      $region35: #{tpu_custom_call.1} parent=5 // pred_region
        %s240 = ssub.s32 %s19, 1
        %s241 = sand.u32 %s46, 1
        %s242 = scalar_lea.sflag [#allocation3], %s241
        %s243 = sand.u32 %s46, 1
        %s244 = smul.addr %s243, 8
        %s245 = scalar_lea.vmem [#allocation2], %s244
        // Predicated region
        $region37: #{tpu_custom_call.1} parent=35 // pred_check
          %p246 = pneg %p59
        $region38: #{tpu_custom_call.1} parent=35 // pred_check_branch
          %248 = sbr.rel (%p246) target = $region40
        $region39: #{tpu_custom_call.1} parent=35 // pred_region
          %249 = dma.done %s242, 128
        $region40: #{tpu_custom_call.1} parent=35 // pred_fallthru
          _
        %s250 = sand.u32 %s93, 1
        %s251 = scalar_lea.sflag [#allocation6], %s250
        %s252 = sand.u32 %s93, 1
        %s253 = smul.addr %s252, 24
        %s254 = scalar_lea.vmem [#allocation5], %s253
        // Predicated region
        $region41: #{tpu_custom_call.1} parent=35 // pred_check
          %p255 = pneg %p106
        $region42: #{tpu_custom_call.1} parent=35 // pred_check_branch
          %257 = sbr.rel (%p255) target = $region44
        $region43: #{tpu_custom_call.1} parent=35 // pred_region
          %258 = dma.done %s251, 384
        $region44: #{tpu_custom_call.1} parent=35 // pred_fallthru
          _
        %s259 = sand.u32 %s46, 1
        %s260 = scalar_lea.sflag [#allocation3], %s259
        %s261 = sand.u32 %s46, 1
        %s262 = smul.addr %s261, 8
        %s263 = scalar_lea.vmem [#allocation2], %s262
        %p264 = pneg %p59
        %p265 = pneg %p56
        %p266 = pneg %p80
        %p267 = pneg %p77
        %s268 = sand.u32 %s93, 1
        %s269 = scalar_lea.sflag [#allocation6], %s268
        %s270 = sand.u32 %s93, 1
        %s271 = smul.addr %s270, 24
        %s272 = scalar_lea.vmem [#allocation5], %s271
        %p273 = pneg %p106
        %p274 = pneg %p103
        %s275 = smul.u32 3, %s28
        %p276 = scmp.lt.s32.totalorder %s275, 11
        %s277 = scalar_select %p276, %s275, 11
        %s278 = smul.addr %s277, 8
        %s279 = scalar_lea.vmem %s3, %s278
        %p280 = pneg %p132
        %p281 = pneg %p129
        %p282 = pneg %p160
        %p283 = pneg %p157
        %s284 = sand.u32 %s147, 1
        %s285 = scalar_lea.sflag [#allocation4], %s284
        %s286 = sand.u32 %s147, 1
        %s287 = smul.addr %s286, 16
        %s288 = scalar_lea.vmem [#allocation7], %s287
        %s289 = sadd.s32 %s28, %s29
        %s290 = smul.u32 2, %s289
        %s291 = smul.u32 3, %s28
        %s292 = smul.u32 3, %s28
        %p293 = scmp.lt.s32.totalorder %s292, 11
        %s294 = scalar_select %p293, %s292, 11
        %s295 = smul.addr %s294, 8
        %s296 = scalar_lea.vmem %s3, %s295
        %s297 = smul.u32 3, %s28
        %s298 = sadd.s32 %s28, %s29
        %s299 = smul.u32 2, %s298
        %s300 = sadd.s32 %s28, %s29
        %s301 = smul.u32 %s300, 16
        %s302 = scalar_lea.vmem %s1, %s301
        %v303 = vld [vmem:[%s302] sm:$0xff]
        %v304 = vld [vmem:[%s302 + $0x8] sm:$0xff]
        %v305 = vld [vmem:[%s245] sm:$0xf]
        %v306 = vld [vmem:[%s245 + $0x4] sm:$0xf]
        %v307 = vunpack.c.l.bf16 %v305
        %v308 = vunpack.c.l.bf16 %v306
        %v309 = vld [vmem:[%s1] sm:$0xff]
        %v310 = vld [vmem:[%s1 + $0x8] sm:$0xff]
        %v311 = vld [vmem:[%s1 + $0x10] sm:$0xff]
        %v312 = vld [vmem:[%s1 + $0x18] sm:$0xff]
        %v313 = vld [vmem:[%s1 + $0x20] sm:$0xff]
        %v314 = vld [vmem:[%s1 + $0x28] sm:$0xff]
        %v315 = vld [vmem:[%s1 + $0x30] sm:$0xff]
        %v316 = vld [vmem:[%s1 + $0x38] sm:$0xff]
        %vm317 = vcmask 523264
        %v319 = vsel %vm317, %v307, 0
        %v322 = vsel %vm317, %v308, 0
        %324 = vmatprep.subr.mxu0 0.0
        %325 = vmatpush1.msra.mxu0 %v309
        %326 = vmatprep.subr.mxu0 0.0
        %327 = vmatpush1.msra.mxu0 %v310
        %328 = vmatprep.subr.mxu0 0.0
        %329 = vmatpush1.msra.mxu0 %v311
        %330 = vmatprep.subr.mxu0 0.0
        %331 = vmatpush1.msra.mxu0 %v312
        %332 = vmatprep.subr.mxu0 0.0
        %333 = vmatpush1.msra.mxu0 %v313
        %334 = vmatprep.subr.mxu0 0.0
        %335 = vmatpush1.msra.mxu0 %v314
        %336 = vmatprep.subr.mxu0 0.0
        %337 = vmatpush1.msra.mxu0 %v315
        %338 = vmatprep.subr.mxu0 0.0
        %339 = vmatpush1.msra.mxu0 %v316
        %340 = vmatprep.subr.mxu0 0.0
        %341 = vmatpush1.msra.mxu0 0.0
        %342 = vmatprep.subr.mxu0 0.0
        %343 = vmatpush1.msra.mxu0 0.0
        %344 = vmatprep.subr.mxu0 0.0
        %345 = vmatpush1.msra.mxu0 0.0
        %346 = vmatprep.subr.mxu0 0.0
        %347 = vmatpush1.msra.mxu0 0.0
        %348 = vmatprep.subr.mxu0 0.0
        %349 = vmatpush1.msra.mxu0 0.0
        %350 = vmatprep.subr.mxu0 0.0
        %351 = vmatpush1.msra.mxu0 0.0
        %352 = vmatprep.subr.mxu0 0.0
        %353 = vmatpush1.msra.mxu0 0.0
        %354 = vmatprep.subr.mxu0 0.0
        %355 = vmatpush1.msra.mxu0 0.0
        %356 = vmatprep.subr.mxu0 0.0
        %357 = vmatpush1.msra.mxu0 0.0
        %358 = vmatprep.subr.mxu0 0.0
        %359 = vmatpush1.msra.mxu0 0.0
        %360 = vmatprep.subr.mxu0 0.0
        %361 = vmatpush1.msra.mxu0 0.0
        %362 = vmatprep.subr.mxu0 0.0
        %363 = vmatpush1.msra.mxu0 0.0
        %364 = vmatprep.subr.mxu0 0.0
        %365 = vmatpush1.msra.mxu0 0.0
        %366 = vmatprep.subr.mxu0 0.0
        %367 = vmatpush1.msra.mxu0 0.0
        %368 = vmatprep.subr.mxu0 0.0
        %369 = vmatpush1.msra.mxu0 0.0
        %370 = vmatprep.subr.mxu0 0.0
        %371 = vmatpush1.msra.mxu0 0.0
        %372 = vmatprep.subr.mxu0 0.0
        %373 = vmatpush1.msra.mxu0 0.0
        %374 = vmatprep.subr.mxu0 0.0
        %375 = vmatpush1.msra.mxu0 0.0
        %376 = vmatprep.subr.mxu0 0.0
        %377 = vmatpush1.msra.mxu0 0.0
        %378 = vmatprep.subr.mxu0 0.0
        %379 = vmatpush1.msra.mxu0 0.0
        %380 = vmatprep.subr.mxu0 0.0
        %381 = vmatpush1.msra.mxu0 0.0
        %382 = vmatprep.subr.mxu0 0.0
        %383 = vmatpush1.msra.mxu0 0.0
        %384 = vmatprep.subr.mxu0 0.0
        %385 = vmatpush1.msra.mxu0 0.0
        %386 = vmatprep.subr.mxu0 0.0
        %387 = vmatpush1.msra.mxu0 0.0
        %388 = vmatprep.mubr.f32.mxu0 0.0
        %389 = vmatmul.mubr.f32.gmra.mrb[0].mxu0 %v319
        %v390 = vpop.f32.mrb[0].mxu0
        %v391 = vadd.f32 0.0, %v390
        %v392 = vpop.f32.mrb[0].mxu0
        %393 = vmatprep.mubr.f32.mxu0 0.0
        %394 = vmatmul.mubr.f32.gmra.mrb[0].mxu0 %v322
        %v395 = vpop.f32.mrb[0].mxu0
        %v396 = vadd.f32 0.0, %v395
        %v397 = vpop.f32.mrb[0].mxu0
        %398 = vdwg.mxu0
        %v399 = vld [vmem:[%s254] sm:$0xff]
        %v400 = vld [vmem:[%s254 + $0x8] sm:$0xff]
        %v401 = vld [vmem:[%s254 + $0x10] sm:$0xff]
        %v402 = vld [vmem:[%s296] sm:$0xff]
        %v403 = vld [vmem:[%s296 + $0x8] sm:$0xff]
        %v404 = vld [vmem:[%s296 + $0x10] sm:$0xff]
        %vm405 = vcmask 195584
        %v407 = vsel %vm405, %v391, 0
        %v410 = vsel %vm405, %v396, 0
        %412 = vmatprep.subr.mxu0 0.0
        %413 = vmatpush1.msra.mxu0 %v402
        %414 = vmatprep.subr.mxu0 0.0
        %415 = vmatpush1.msra.mxu0 %v403
        %416 = vmatprep.subr.mxu0 0.0
        %417 = vmatpush1.msra.mxu0 %v404
        %418 = vmatprep.subr.mxu0 0.0
        %419 = vmatpush1.msra.mxu0 0.0
        %420 = vmatprep.subr.mxu0 0.0
        %421 = vmatpush1.msra.mxu0 0.0
        %422 = vmatprep.subr.mxu0 0.0
        %423 = vmatpush1.msra.mxu0 0.0
        %424 = vmatprep.subr.mxu0 0.0
        %425 = vmatpush1.msra.mxu0 0.0
        %426 = vmatprep.subr.mxu0 0.0
        %427 = vmatpush1.msra.mxu0 0.0
        %428 = vmatprep.subr.mxu0 0.0
        %429 = vmatpush1.msra.mxu0 0.0
        %430 = vmatprep.subr.mxu0 0.0
        %431 = vmatpush1.msra.mxu0 0.0
        %432 = vmatprep.subr.mxu0 0.0
        %433 = vmatpush1.msra.mxu0 0.0
        %434 = vmatprep.subr.mxu0 0.0
        %435 = vmatpush1.msra.mxu0 0.0
        %436 = vmatprep.subr.mxu0 0.0
        %437 = vmatpush1.msra.mxu0 0.0
        %438 = vmatprep.subr.mxu0 0.0
        %439 = vmatpush1.msra.mxu0 0.0
        %440 = vmatprep.subr.mxu0 0.0
        %441 = vmatpush1.msra.mxu0 0.0
        %442 = vmatprep.subr.mxu0 0.0
        %443 = vmatpush1.msra.mxu0 0.0
        %444 = vmatprep.subr.mxu0 0.0
        %445 = vmatpush1.msra.mxu0 0.0
        %446 = vmatprep.subr.mxu0 0.0
        %447 = vmatpush1.msra.mxu0 0.0
        %448 = vmatprep.subr.mxu0 0.0
        %449 = vmatpush1.msra.mxu0 0.0
        %450 = vmatprep.subr.mxu0 0.0
        %451 = vmatpush1.msra.mxu0 0.0
        %452 = vmatprep.subr.mxu0 0.0
        %453 = vmatpush1.msra.mxu0 0.0
        %454 = vmatprep.subr.mxu0 0.0
        %455 = vmatpush1.msra.mxu0 0.0
        %456 = vmatprep.subr.mxu0 0.0
        %457 = vmatpush1.msra.mxu0 0.0
        %458 = vmatprep.subr.mxu0 0.0
        %459 = vmatpush1.msra.mxu0 0.0
        %460 = vmatprep.subr.mxu0 0.0
        %461 = vmatpush1.msra.mxu0 0.0
        %462 = vmatprep.subr.mxu0 0.0
        %463 = vmatpush1.msra.mxu0 0.0
        %464 = vmatprep.subr.mxu0 0.0
        %465 = vmatpush1.msra.mxu0 0.0
        %466 = vmatprep.subr.mxu0 0.0
        %467 = vmatpush1.msra.mxu0 0.0
        %468 = vmatprep.subr.mxu0 0.0
        %469 = vmatpush1.msra.mxu0 0.0
        %470 = vmatprep.subr.mxu0 0.0
        %471 = vmatpush1.msra.mxu0 0.0
        %472 = vmatprep.subr.mxu0 0.0
        %473 = vmatpush1.msra.mxu0 0.0
        %474 = vmatprep.subr.mxu0 0.0
        %475 = vmatpush1.msra.mxu0 0.0
        %476 = vmatprep.mubr.f32.mxu0 0.0
        %477 = vmatmul.mubr.f32.gmra.mrb[0].mxu0 %v407
        %v478 = vpop.f32.mrb[0].mxu0
        %v479 = vadd.f32 0.0, %v478
        %v480 = vpop.f32.mrb[0].mxu0
        %481 = vmatprep.mubr.f32.mxu0 0.0
        %482 = vmatmul.mubr.f32.gmra.mrb[0].mxu0 %v410
        %v483 = vpop.f32.mrb[0].mxu0
        %v484 = vadd.f32 0.0, %v483
        %v485 = vpop.f32.mrb[0].mxu0
        %486 = vdwg.mxu0
        %v488 = vsel %vm405, %v303, 0
        %v491 = vsel %vm405, %v304, 0
        %493 = vmatprep.subr.mxu0 0.0
        %494 = vmatpush1.msra.mxu0 %v399
        %495 = vmatprep.subr.mxu0 0.0
        %496 = vmatpush1.msra.mxu0 %v400
        %497 = vmatprep.subr.mxu0 0.0
        %498 = vmatpush1.msra.mxu0 %v401
        %499 = vmatprep.subr.mxu0 0.0
        %500 = vmatpush1.msra.mxu0 0.0
        %501 = vmatprep.subr.mxu0 0.0
        %502 = vmatpush1.msra.mxu0 0.0
        %503 = vmatprep.subr.mxu0 0.0
        %504 = vmatpush1.msra.mxu0 0.0
        %505 = vmatprep.subr.mxu0 0.0
        %506 = vmatpush1.msra.mxu0 0.0
        %507 = vmatprep.subr.mxu0 0.0
        %508 = vmatpush1.msra.mxu0 0.0
        %509 = vmatprep.subr.mxu0 0.0
        %510 = vmatpush1.msra.mxu0 0.0
        %511 = vmatprep.subr.mxu0 0.0
        %512 = vmatpush1.msra.mxu0 0.0
        %513 = vmatprep.subr.mxu0 0.0
        %514 = vmatpush1.msra.mxu0 0.0
        %515 = vmatprep.subr.mxu0 0.0
        %516 = vmatpush1.msra.mxu0 0.0
        %517 = vmatprep.subr.mxu0 0.0
        %518 = vmatpush1.msra.mxu0 0.0
        %519 = vmatprep.subr.mxu0 0.0
        %520 = vmatpush1.msra.mxu0 0.0
        %521 = vmatprep.subr.mxu0 0.0
        %522 = vmatpush1.msra.mxu0 0.0
        %523 = vmatprep.subr.mxu0 0.0
        %524 = vmatpush1.msra.mxu0 0.0
        %525 = vmatprep.subr.mxu0 0.0
        %526 = vmatpush1.msra.mxu0 0.0
        %527 = vmatprep.subr.mxu0 0.0
        %528 = vmatpush1.msra.mxu0 0.0
        %529 = vmatprep.subr.mxu0 0.0
        %530 = vmatpush1.msra.mxu0 0.0
        %531 = vmatprep.subr.mxu0 0.0
        %532 = vmatpush1.msra.mxu0 0.0
        %533 = vmatprep.subr.mxu0 0.0
        %534 = vmatpush1.msra.mxu0 0.0
        %535 = vmatprep.subr.mxu0 0.0
        %536 = vmatpush1.msra.mxu0 0.0
        %537 = vmatprep.subr.mxu0 0.0
        %538 = vmatpush1.msra.mxu0 0.0
        %539 = vmatprep.subr.mxu0 0.0
        %540 = vmatpush1.msra.mxu0 0.0
        %541 = vmatprep.subr.mxu0 0.0
        %542 = vmatpush1.msra.mxu0 0.0
        %543 = vmatprep.subr.mxu0 0.0
        %544 = vmatpush1.msra.mxu0 0.0
        %545 = vmatprep.subr.mxu0 0.0
        %546 = vmatpush1.msra.mxu0 0.0
        %547 = vmatprep.subr.mxu0 0.0
        %548 = vmatpush1.msra.mxu0 0.0
        %549 = vmatprep.subr.mxu0 0.0
        %550 = vmatpush1.msra.mxu0 0.0
        %551 = vmatprep.subr.mxu0 0.0
        %552 = vmatpush1.msra.mxu0 0.0
        %553 = vmatprep.subr.mxu0 0.0
        %554 = vmatpush1.msra.mxu0 0.0
        %555 = vmatprep.subr.mxu0 0.0
        %556 = vmatpush1.msra.mxu0 0.0
        %557 = vmatprep.mubr.f32.mxu0 0.0
        %558 = vmatmul.mubr.f32.gmra.mrb[0].mxu0 %v488
        %v559 = vpop.f32.mrb[0].mxu0
        %v560 = vadd.f32 %v479, %v559
        %v561 = vpop.f32.mrb[0].mxu0
        %562 = vmatprep.mubr.f32.mxu0 0.0
        %563 = vmatmul.mubr.f32.gmra.mrb[0].mxu0 %v491
        %v564 = vpop.f32.mrb[0].mxu0
        %v565 = vadd.f32 %v484, %v564
        %v566 = vpop.f32.mrb[0].mxu0
        %567 = vdwg.mxu0
        %568 = vst [vmem:[%s288] sm:$0xff] %v560
        %569 = vst [vmem:[%s288 + $0x8] sm:$0xff] %v565
        %s570 = sand.u32 %s147, 1
        %s571 = scalar_lea.sflag [#allocation4], %s570
        %s572 = sand.u32 %s147, 1
        %s573 = smul.addr %s572, 16
        %s574 = scalar_lea.vmem [#allocation7], %s573
        // Predicated region
        $region45: #{tpu_custom_call.1} parent=35 // pred_check
          %p575 = pneg %p157
        $region46: #{tpu_custom_call.1} parent=35 // pred_check_branch
          %577 = sbr.rel (%p575) target = $region48
        $region47: #{tpu_custom_call.1} parent=35 // pred_region
          %s578 = sadd.s32 %s28, %s29
          %s579 = smul.u32 2, %s578
          %s581 = ssub.s32 256, 256
          %582 = vsyncadd %s571, %s581
          %s583 = smul.addr %s579, 128
          %s584 = scalar_lea.hbm %s4, %s583
          %s585 = sshll.u32 %s574, 4
          %s586 = int_to_ptr.vmem [resolvable:$true] %s585
          %591 = dma.vmem_to_hbm [thread:$0]  %s586, 256, %s584, %s571, 128, 128, 8
        $region48: #{tpu_custom_call.1} parent=35 // pred_fallthru
          _
      $region36: #{tpu_custom_call.1} parent=5 // pred_fallthru
        _
      %p592 = scmp.le.s32.totalorder 2, %s19
      // Predicated region
      $region49: #{tpu_custom_call.1} parent=5 // pred_check
        %p593 = pneg %p592
      $region50: #{tpu_custom_call.1} parent=5 // pred_check_branch
        %595 = sbr.rel (%p593) target = $region52
      $region51: #{tpu_custom_call.1} parent=5 // pred_region
        %s596 = ssub.s32 %s19, 2
        // Predicated region
        $region53: #{tpu_custom_call.1} parent=51 // pred_check
          %p597 = pneg %p163
        $region54: #{tpu_custom_call.1} parent=51 // pred_check_branch
          %599 = sbr.rel (%p597) target = $region56
        $region55: #{tpu_custom_call.1} parent=51 // pred_region
          %s600 = sand.u32 %s148, 1
          %s601 = scalar_lea.sflag [#allocation4], %s600
          %s602 = sand.u32 %s148, 1
          %s603 = smul.addr %s602, 16
          %s604 = scalar_lea.vmem [#allocation7], %s603
          %605 = dma.done %s601, 256
        $region56: #{tpu_custom_call.1} parent=51 // pred_fallthru
          _
      $region52: #{tpu_custom_call.1} parent=5 // pred_fallthru
        _
    $region6: #{tpu_custom_call.1} parent=1 // loop_footer
      %s23 = sadd.s32 1, %s19
    $region7: #{tpu_custom_call.1} parent=1 // loop_footer_branch
      %18 = sbr.rel target = $region3
    $region8: #{tpu_custom_call.1} parent=1 // loop_exit
      _
    %606 = vsyncpa [#allocation3], 1
    %s607 = scalar_lea.sflag [#allocation3], 1
    %608 = vsyncpa %s607, 1
    %609 = vsyncpa [#allocation6], 1
    %s610 = scalar_lea.sflag [#allocation6], 1
    %611 = vsyncpa %s610, 1
    %612 = vsyncpa [#allocation4], 1
    %s613 = scalar_lea.sflag [#allocation4], 1
    %614 = vsyncpa %s613, 1

</llo_original>
